<compile_context>
chip_gen: v5e
topology: v5e:2x2
jax: 0.10.0
libtpu: 0.0.40
codegen_flags: <defaults>
</compile_context>

<pallas_src>
import functools

import jax
import jax.numpy as jnp
from jax import lax
from jax.experimental import pallas as pl
from jax.experimental.pallas import tpu as pltpu


# ----------------------------------------------------------------------------------
# Small helpers
# ----------------------------------------------------------------------------------
def _largest_divisor_leq(n, cap):
    """Largest divisor of n that is <= cap (>= 1)."""
    cap = max(1, int(cap))
    best = 1
    d = 1
    while d * d <= n:
        if n % d == 0:
            for c in (d, n // d):
                if c <= cap:
                    best = max(best, c)
        d += 1
    return best


def _tpu_limits():
    """Per-chip block-sizing knobs.

    v7x-class (<= 64 MiB VMEM, 2 TensorCores): keep >= 4 grid steps within ~20 MiB of
    double-buffered blocks.  v5e/v6e (128 MiB VMEM, 1 TensorCore): let blocks grow.
    """
    vmem_cap = 128 << 20
    try:
        info = pltpu.get_tpu_info()
        cap = getattr(info, "vmem_capacity_bytes", None)
        if cap:
            vmem_cap = int(cap)
    except Exception:
        pass
    if vmem_cap <= (64 << 20):
        return dict(budget_bytes=20 << 20, min_steps=4, vmem_limit=32 << 20)
    return dict(budget_bytes=32 << 20, min_steps=1, vmem_limit=64 << 20)


def _bilinear_matrix(n_out, n_in):
    # F.interpolate(mode="bilinear", align_corners=True) as a dense resampling matrix.
    if n_out == 1:
        src = jnp.zeros((1,), jnp.float32)
    else:
        src = jnp.arange(n_out, dtype=jnp.float32) * (n_in - 1) / (n_out - 1)
    lo = jnp.floor(src).astype(jnp.int32)
    hi = jnp.minimum(lo + 1, n_in - 1)
    frac = src - lo.astype(jnp.float32)
    cols = jnp.arange(n_in)
    w_lo = (cols[None, :] == lo[:, None]).astype(jnp.float32) * (1.0 - frac)[:, None]
    w_hi = (cols[None, :] == hi[:, None]).astype(jnp.float32) * frac[:, None]
    return w_lo + w_hi


def _nearest_matrix(n_out, n_in):
    # F.interpolate(mode="nearest"): src = floor(i * n_in / n_out), integer arithmetic.
    src = (jnp.arange(n_out, dtype=jnp.int32) * n_in) // n_out
    src = jnp.clip(src, 0, n_in - 1)
    cols = jnp.arange(n_in)
    return (cols[None, :] == src[:, None]).astype(jnp.float32)


# ----------------------------------------------------------------------------------
# Kernel 1: separable image resize (bilinear align_corners=True or nearest).
#   * W-resize of all P planes in the block as ONE (P*H_in, W_in)@(W_in, W_out) matmul.
#   * H-resize as a P-batched dot_general (shared (H_out, H_in) weights).
#   * Output is emitted channel-major (C, N, H_out, W_out) via the out index_map, so
#     the dense head consumes it with free reshapes only (no HBM transpose/concat).
# ----------------------------------------------------------------------------------
def _resize_kernel(wh_ref, wwt_ref, img_ref, out_ref):
    # wh: (H_out, H_in), wwt: (W_in, W_out), img: (P, H_in, W_in) -> out: (P, H_out, W_out)
    p, h_in, w_in = img_ref.shape
    h_out = wh_ref.shape[0]
    w_out = wwt_ref.shape[1]

    # Batched W-resize: one big MXU matmul for the whole plane block.
    t = jnp.dot(img_ref[...].reshape(p * h_in, w_in), wwt_ref[...],
                preferred_element_type=jnp.float32)
    t = t.reshape(p, h_in, w_out)

    # H-resize: P-batched (H_out, H_in) @ (H_in, W_out) with shared weights.
    whb = jnp.broadcast_to(wh_ref[...], (p, h_out, h_in))
    out_ref[...] = lax.dot_general(
        whb, t, dimension_numbers=(((2,), (1,)), ((0,), (0,))),
        preferred_element_type=jnp.float32)


def pallas_resize_cmajor(x, wh, ww, *, budget_bytes, min_steps, vmem_limit):
    """x: (N, C, H, W) f32 -> (C, N, H_out, W_out) f32 (channel-major plane order)."""
    n, c, h, w = x.shape
    h_out, w_out = wh.shape[0], ww.shape[0]
    x = x.astype(jnp.float32)
    wh = jnp.asarray(wh, jnp.float32)
    wwt = jnp.asarray(ww, jnp.float32).T

    # Plane-block sizing: double-buffered in/out blocks + in-kernel intermediates.
    io_pp = 4 * (h * w + h_out * w_out)
    tmp_pp = 4 * (h * w_out + h_out * h)
    cap = max(1, budget_bytes // (2 * io_pp + tmp_pp))
    if min_steps > 1:
        need = -(-min_steps // c)                       # ceil(min_steps / c)
        if n >= need:
            cap = min(cap, n // need)
    p = _largest_divisor_leq(n, cap)
    grid = (c, n // p)

    flops = 2 * n * c * (h * w * w_out + h_out * h * w_out)
    bytes_accessed = 4 * n * c * (h * w + h_out * w_out) + 4 * (wh.size + wwt.size)

    return pl.pallas_call(
        _resize_kernel,
        out_shape=jax.ShapeDtypeStruct((c, n, h_out, w_out), jnp.float32),
        grid_spec=pltpu.PrefetchScalarGridSpec(
            num_scalar_prefetch=0,
            grid=grid,
            in_specs=[
                pl.BlockSpec((h_out, h), lambda ci, i: (0, 0)),
                pl.BlockSpec((w, w_out), lambda ci, i: (0, 0)),
                pl.BlockSpec((p, None, h, w), lambda ci, i: (i, ci, 0, 0)),
            ],
            out_specs=pl.BlockSpec((None, p, h_out, w_out), lambda ci, i: (ci, i, 0, 0)),
        ),
        compiler_params=pltpu.CompilerParams(
            dimension_semantics=("parallel", "parallel"),
            vmem_limit_bytes=int(vmem_limit)),
        cost_estimate=pl.CostEstimate(flops=int(flops), transcendentals=0,
                                      bytes_accessed=int(bytes_accessed)),
    )(wh, wwt, x)


# ----------------------------------------------------------------------------------
# Kernel 2: FUSED dense prediction head (stub for DenseTrack3D) + post-processing.
#   Full-vreg layout: per grid step the kernel sees vfeat (C, R, 128), depth (R, 128)
#   and writes a packed lane-dense slab (8, R, 128) =
#   [u, v, depth, X, Y, Z, vis_flag, conf].  The base pixel grid (x, y) is derived
#   in-kernel from broadcasted_iota + the block's pixel offset.
# ----------------------------------------------------------------------------------
_PACK_U, _PACK_V, _PACK_D, _PACK_X, _PACK_Y, _PACK_Z, _PACK_VIS, _PACK_CONF = range(8)


def _head_post_kernel(w_ref, b_ref, vfeat_ref, dfeat_ref, out_ref, *,
                      n_pix, ws, chunk_pixels, scale_x, scale_y,
                      inv_fx, inv_fy, cx, cy, vis_thresh):
    depth_in = dfeat_ref[...]                                # (R, 128) f32
    c = vfeat_ref.shape[0]
    planes = [vfeat_ref[k] for k in range(c)] + [depth_in]   # Cin full-vreg planes
    cin = c + 1

    def lin(o):                                              # SMEM-scalar broadcast FMAs
        acc = planes[0] * w_ref[o, 0]
        for k in range(1, cin):
            acc = acc + planes[k] * w_ref[o, k]
        return acc + b_ref[o]

    # base pixel grid generated in-kernel (no HBM input)
    shape = depth_in.shape
    rr = lax.broadcasted_iota(jnp.int32, shape, 0)
    ll = lax.broadcasted_iota(jnp.int32, shape, 1)
    gidx = pl.program_id(0) * chunk_pixels + rr * 128 + ll   # global (padded) pixel index
    pix = gidx % n_pix                                       # index within a frame
    gx = (pix % ws).astype(jnp.float32)
    gy = (pix // ws).astype(jnp.float32)

    # stub head: [du, dv, dd, vis, conf]
    x_tr = gx + 0.5 * jnp.tanh(lin(0))
    y_tr = gy + 0.5 * jnp.tanh(lin(1))
    d = depth_in + 0.1 * jnp.tanh(lin(2))
    vis = jax.nn.sigmoid(lin(3))
    conf = jax.nn.sigmoid(lin(4))

    # fused post-processing: scale-to-origin + pinhole unprojection + vis threshold
    u = x_tr * scale_x
    v = y_tr * scale_y

    out_ref[_PACK_U] = u
    out_ref[_PACK_V] = v
    out_ref[_PACK_D] = d
    out_ref[_PACK_X] = (u - cx) * inv_fx * d
    out_ref[_PACK_Y] = (v - cy) * inv_fy * d
    out_ref[_PACK_Z] = d
    out_ref[_PACK_VIS] = (vis > vis_thresh).astype(jnp.float32)
    out_ref[_PACK_CONF] = conf


def pallas_dense_head_post(vfeat, dfeat, w, b, *, n_pix, ws, scale_x, scale_y,
                           fx, fy, cx, cy, vis_thresh, budget_bytes, min_steps,
                           vmem_limit):
    # vfeat: (C, M, 128), dfeat: (M, 128); pixel axis already padded to 8*128 multiples.
    c, m, lanes = vfeat.shape
    assert lanes == 128 and m % 8 == 0
    np_pad = m * 128
    cin = c + 1

    # chunk purely in multiples of 8*128; size against budget, keep >=min_steps steps.
    io_bpp = 4 * (cin + 8)                 # double-buffered bytes / pixel (in + out)
    tmp_bpp = 4 * 12                       # rough single-buffered temporaries / pixel
    cap_pixels = max(1024, budget_bytes // (2 * io_bpp + tmp_bpp))
    units = np_pad // 1024
    cap_units = max(1, cap_pixels // 1024)
    if min_steps > 1:
        cap_units = min(cap_units, max(1, units // min_steps))
    chunk = 1024 * _largest_divisor_leq(units, min(cap_units, units))
    r = chunk // 128
    grid = np_pad // chunk

    kernel = functools.partial(
        _head_post_kernel, n_pix=int(n_pix), ws=int(ws), chunk_pixels=int(chunk),
        scale_x=float(scale_x), scale_y=float(scale_y),
        inv_fx=1.0 / float(fx), inv_fy=1.0 / float(fy),
        cx=float(cx), cy=float(cy), vis_thresh=float(vis_thresh))

    # third buffer on the feature stream only when there are enough steps to hide DMA
    vfeat_kwargs = {}
    if grid >= 4:
        vfeat_kwargs["pipeline_mode"] = pl.Buffered(3)

    flops = np_pad * (2 * cin * 5 + 30)
    bytes_accessed = 4 * np_pad * (cin + 8) + 4 * (w.size + b.size)

    return pl.pallas_call(
        kernel,
        out_shape=jax.ShapeDtypeStruct((8, m, 128), jnp.float32),
        grid_spec=pltpu.PrefetchScalarGridSpec(
            num_scalar_prefetch=0,
            grid=(grid,),
            in_specs=[
                pl.BlockSpec(memory_space=pltpu.MemorySpace.SMEM),         # w (5, Cin)
                pl.BlockSpec(memory_space=pltpu.MemorySpace.SMEM),         # b (5,)
                pl.BlockSpec((c, r, 128), lambda i: (0, i, 0), **vfeat_kwargs),
                pl.BlockSpec((r, 128), lambda i: (i, 0)),                  # depth
            ],
            out_specs=pl.BlockSpec((8, r, 128), lambda i: (0, i, 0)),
        ),
        compiler_params=pltpu.CompilerParams(
            dimension_semantics=("parallel",),
            vmem_limit_bytes=int(vmem_limit)),
        cost_estimate=pl.CostEstimate(flops=int(flops), transcendentals=int(5 * np_pad),
                                      bytes_accessed=int(bytes_accessed)),
    )(w, b, vfeat, dfeat)


# ----------------------------------------------------------------------------------
# Glue helpers (plain JAX: query-grid setup and data-dependent color gather)
# ----------------------------------------------------------------------------------
def get_points_on_a_grid(size, extent):
    sy, sx = size
    he, we = extent
    center = (he / 2.0, we / 2.0)
    margin = we / 64.0
    range_y = (margin - he / 2.0 + center[0], he / 2.0 + center[0] - margin)
    range_x = (margin - we / 2.0 + center[1], we / 2.0 + center[1] - margin)
    gy = jnp.linspace(range_y[0], range_y[1], sy)
    gx = jnp.linspace(range_x[0], range_x[1], sx)
    grid_y, grid_x = jnp.meshgrid(gy, gx, indexing="ij")
    return jnp.stack([grid_x, grid_y], axis=-1).reshape(1, -1, 2)


def _bilinear_sample_colors(img, uv, h, w):
    # img: (B, C, h, w); uv: (B, N, 2) pixel coordinates (align_corners=True convention).
    # TODO(synk): exact grid_sample normalization of the reference sampler is assumed.
    px = jnp.clip(uv[..., 0], 0.0, w - 1.0)
    py = jnp.clip(uv[..., 1], 0.0, h - 1.0)
    x0 = jnp.floor(px)
    y0 = jnp.floor(py)
    wx1 = px - x0
    wy1 = py - y0
    wx0 = 1.0 - wx1
    wy0 = 1.0 - wy1
    x0i = jnp.clip(x0.astype(jnp.int32), 0, w - 1)
    x1i = jnp.clip(x0i + 1, 0, w - 1)
    y0i = jnp.clip(y0.astype(jnp.int32), 0, h - 1)
    y1i = jnp.clip(y0i + 1, 0, h - 1)

    def gather_one(im, yy, xx):      # im (C,h,w), yy/xx (N,)
        return im[:, yy, xx]         # (C, N)

    g = jax.vmap(gather_one)
    c00 = g(img, y0i, x0i)
    c01 = g(img, y0i, x1i)
    c10 = g(img, y1i, x0i)
    c11 = g(img, y1i, x1i)
    col = (c00 * (wy0 * wx0)[:, None, :] + c01 * (wy0 * wx1)[:, None, :]
           + c10 * (wy1 * wx0)[:, None, :] + c11 * (wy1 * wx1)[:, None, :])
    return jnp.transpose(col, (0, 2, 1))  # (B, N, C)


# ----------------------------------------------------------------------------------
# DensePredictor3D.forward
# ----------------------------------------------------------------------------------
def dense_predictor3d_forward(video, videodepth, params, interp_shape=(16, 16),
                              grid_query_frame=0, scale_input=True, scale_to_origin=True,
                              use_efficient_global_attn=True):
    B, T, C, H, W = video.shape
    src_step = grid_query_frame
    ori_video = video                                        # video.clone()
    limits = _tpu_limits()

    if scale_input:
        hs, ws = interp_shape
        vid_cm = pallas_resize_cmajor(video.reshape(B * T, C, H, W),
                                      _bilinear_matrix(hs, H), _bilinear_matrix(ws, W),
                                      **limits)              # (C, B*T, hs, ws)
        dep_cm = pallas_resize_cmajor(videodepth.reshape(B * T, 1, H, W),
                                      _nearest_matrix(hs, H), _nearest_matrix(ws, W),
                                      **limits)              # (1, B*T, hs, ws)
    else:
        hs, ws = H, W
        vid_cm = jnp.transpose(video, (2, 0, 1, 3, 4)).reshape(C, B * T, hs, ws)
        dep_cm = jnp.transpose(videodepth, (2, 0, 1, 3, 4)).reshape(1, B * T, hs, ws)

    # sparse queries (only consumed by the inner model; inner model is stubbed)
    if use_efficient_global_attn:
        sparse_xy = jnp.floor(get_points_on_a_grid((36, 48), (hs, ws)))   # .long().float()
        sparse_xy = jnp.broadcast_to(sparse_xy, (B,) + sparse_xy.shape[1:])
        tvec = jnp.full((B, sparse_xy.shape[1], 1), float(src_step), jnp.float32)
        xi = jnp.clip(jnp.round(sparse_xy[..., 0]).astype(jnp.int32), 0, ws - 1)
        yi = jnp.clip(jnp.round(sparse_xy[..., 1]).astype(jnp.int32), 0, hs - 1)
        d0 = dep_cm[0].reshape(B, T, hs, ws)[:, src_step]                 # (B, hs, ws)
        sparse_d = jax.vmap(lambda dep, yy, xx: dep[yy, xx])(d0, yi, xi)[..., None]
        sparse_queries = jnp.concatenate([tvec, sparse_xy, sparse_d], axis=2)  # (B,M,4)
    else:
        sparse_queries = None
    del sparse_queries  # TODO(synk): would feed the real DenseTrack3D transformer.

    # ---- inner model (stub) + post-processing, fused into one Pallas kernel ----
    Tp = T - src_step
    n = hs * ws
    Np = B * Tp * n

    # channel-major features; pixel axis ordered (b, t, y, x) — free reshapes only
    vfeat = vid_cm.reshape(C, B, T, n)[:, :, src_step:].reshape(C, Np)
    dfeat = dep_cm.reshape(B, T, n)[:, src_step:].reshape(Np)
    np_pad = -(-Np // 1024) * 1024
    if np_pad != Np:
        vfeat = jnp.pad(vfeat, ((0, 0), (0, np_pad - Np)))
        dfeat = jnp.pad(dfeat, ((0, np_pad - Np),))
    m = np_pad // 128
    vfeat = vfeat.reshape(C, m, 128)
    dfeat = dfeat.reshape(m, 128)

    if scale_to_origin:
        scale_x = (W - 1) / float(ws - 1)
        scale_y = (H - 1) / float(hs - 1)
        hc, wc = H, W
    else:
        scale_x = scale_y = 1.0
        hc, wc = hs, ws
    # pinhole intrinsics: focal = width, principal point = (W//2, H//2)
    # TODO(synk): convert_trajs_uvd_to_trajs_3d's exact intrinsics convention is assumed.
    fx = fy = float(wc)
    cx = float(wc // 2)
    cy = float(hc // 2)

    packed = pallas_dense_head_post(
        vfeat, dfeat, params["w_head"], params["b_head"],
        n_pix=n, ws=ws, scale_x=scale_x, scale_y=scale_y,
        fx=fx, fy=fy, cx=cx, cy=cy, vis_thresh=0.8, **limits)

    packed = packed.reshape(8, np_pad)[:, :Np].reshape(8, B, Tp, n)
    trajs_uv = jnp.stack([packed[_PACK_U], packed[_PACK_V]], axis=-1)                   # (B,Tp,n,2)
    trajs_depth = packed[_PACK_D][..., None]                                            # (B,Tp,n,1)
    trajs_3d = jnp.stack([packed[_PACK_X], packed[_PACK_Y], packed[_PACK_Z]], axis=-1)  # (B,Tp,n,3)
    vis_bool = packed[_PACK_VIS].astype(bool)                                           # (B,Tp,n)
    conf_out = packed[_PACK_CONF]                                                       # (B,Tp,n)

    # colors at the query frame.  The trimmed trajectory axis starts at src_step, so the
    # query frame is index 0 there; the image is indexed with the original frame index.
    if scale_to_origin:
        qframe = ori_video[:, grid_query_frame]                                         # (B,3,H,W)
    else:
        qframe = jnp.transpose(vid_cm.reshape(C, B, T, hs, ws)[:, :, grid_query_frame],
                               (1, 0, 2, 3))                                            # (B,3,hs,ws)
    uv_q = trajs_uv[:, 0]                                                               # (B,n,2)
    colors = _bilinear_sample_colors(qframe, uv_q, hc, wc)
    intrs = jnp.broadcast_to(
        jnp.array([[fx, 0.0, cx], [0.0, fy, cy], [0.0, 0.0, 1.0]], jnp.float32), (B, 3, 3))

    trajs_3d_dict = {"coords": trajs_3d, "colors": colors, "vis": vis_bool, "intrs": intrs}
    return {
        "trajs_uv": trajs_uv,
        "trajs_depth": trajs_depth,
        "vis": vis_bool,
        "trajs_3d_dict": trajs_3d_dict,
        "conf": conf_out,
        "dense_reso": interp_shape,
    }


if __name__ == "__main__":
    key = jax.random.PRNGKey(0)
    k1, k2, k3, k4 = jax.random.split(key, 4)

    B, T, C, H, W = 2, 4, 3, 24, 24
    interp_shape = (16, 16)

    video = jax.random.uniform(k1, (B, T, C, H, W), jnp.float32)
    videodepth = jax.random.uniform(k2, (B, T, 1, H, W), jnp.float32, minval=1.0, maxval=3.0)

    # deterministic synthetic parameters for the stub head:
    #   5 output heads [du, dv, dd, vis, conf] over Cin = 4 (rgb + depth)
    params = {
        "w_head": 0.1 * jax.random.normal(k3, (5, C + 1), jnp.float32),
        "b_head": 0.1 * jax.random.normal(k4, (5,), jnp.float32),
    }

    out = dense_predictor3d_forward(video, videodepth, params, interp_shape=interp_shape,
                                    grid_query_frame=0, scale_input=True,
                                    scale_to_origin=True, use_efficient_global_attn=True)

    for leaf in jax.tree_util.tree_leaves(out):
        if isinstance(leaf, jax.Array):
            jax.block_until_ready(leaf)

    print("KERNEL_OK")
</pallas_src>

<mosaic_0001>
module attributes {stable_mosaic.version = 11 : i64} {
  func.func @_resize_kernel(%arg0: i32, %arg1: i32, %arg2: memref<16x24xf32, #tpu.memory_space<vmem>>, %arg3: memref<24x16xf32, #tpu.memory_space<vmem>>, %arg4: memref<8x1x24x24xf32, #tpu.memory_space<vmem>>, %arg5: memref<1x8x16x16xf32, #tpu.memory_space<vmem>>) attributes {dimension_semantics = [#tpu.dimension_semantics<parallel>, #tpu.dimension_semantics<parallel>], iteration_bounds = array<i64: 3, 1>, scalar_prefetch = 0 : i64, scratch_operands = 0 : i64, tpu.core_type = #tpu.core_type<tc>, window_params = [{pipeline_mode = #tpu.pipeline_mode<synchronous>, transform_indices = @transform_0, window_bounds = array<i64: 16, 24>}, {pipeline_mode = #tpu.pipeline_mode<synchronous>, transform_indices = @transform_1, window_bounds = array<i64: 24, 16>}, {transform_indices = @transform_2, window_bounds = array<i64: 8, 1, 24, 24>}, {transform_indices = @transform_3, window_bounds = array<i64: 1, 8, 16, 16>}]} {
    %c0 = arith.constant 0 : index
    %c0_0 = arith.constant 0 : index
    %c0_1 = arith.constant 0 : index
    %c0_2 = arith.constant 0 : index
    %0 = vector.load %arg4[%c0, %c0_0, %c0_1, %c0_2] : memref<8x1x24x24xf32, #tpu.memory_space<vmem>>, vector<8x1x24x24xf32>
    %1 = vector.shape_cast %0 : vector<8x1x24x24xf32> to vector<8x24x24xf32>
    %2 = vector.shape_cast %1 : vector<8x24x24xf32> to vector<192x24xf32>
    %c0_3 = arith.constant 0 : index
    %c0_4 = arith.constant 0 : index
    %3 = vector.load %arg3[%c0_3, %c0_4] : memref<24x16xf32, #tpu.memory_space<vmem>>, vector<24x16xf32>
    %cst = arith.constant dense<0.000000e+00> : vector<192x16xf32>
    %4 = tpu.matmul %2, %3, %cst {dimension_numbers = #tpu.dot_dimension_numbers<[1], [0], [0], [1], [0, 0, 1, 1], [], []>} : vector<192x24xf32>, vector<24x16xf32>, vector<192x16xf32> -> vector<192x16xf32>
    %5 = vector.shape_cast %4 : vector<192x16xf32> to vector<8x24x16xf32>
    %c0_5 = arith.constant 0 : index
    %c0_6 = arith.constant 0 : index
    %6 = vector.load %arg2[%c0_5, %c0_6] : memref<16x24xf32, #tpu.memory_space<vmem>>, vector<16x24xf32>
    %7 = vector.shape_cast %6 : vector<16x24xf32> to vector<1x16x24xf32>
    %8 = vector.broadcast %7 : vector<1x16x24xf32> to vector<8x16x24xf32>
    %cst_7 = arith.constant dense<0.000000e+00> : vector<8x16x16xf32>
    %9 = tpu.matmul %8, %5, %cst_7 {dimension_numbers = #tpu.dot_dimension_numbers<[2], [1], [1], [2], [0, 0, 0, 1, 1, 2], [0], [0]>} : vector<8x16x24xf32>, vector<8x24x16xf32>, vector<8x16x16xf32> -> vector<8x16x16xf32>
    %c0_8 = arith.constant 0 : index
    %c0_9 = arith.constant 0 : index
    %c0_10 = arith.constant 0 : index
    %c0_11 = arith.constant 0 : index
    %10 = vector.load %arg5[%c0_8, %c0_9, %c0_10, %c0_11] : memref<1x8x16x16xf32, #tpu.memory_space<vmem>>, vector<1x8x16x16xf32>
    %11 = vector.shape_cast %10 : vector<1x8x16x16xf32> to vector<8x16x16xf32>
    %12 = vector.shape_cast %9 : vector<8x16x16xf32> to vector<1x8x16x16xf32>
    tpu.vector_store %arg5[%c0_8, %c0_9, %c0_10, %c0_11], %12 {strides = array<i32>} : memref<1x8x16x16xf32, #tpu.memory_space<vmem>>, vector<1x8x16x16xf32>,
    return
  }
  func.func @transform_0(%arg0: i32, %arg1: i32) -> (i32, i32) {
    %c0_i32 = arith.constant 0 : i32
    %c0_i32_0 = arith.constant 0 : i32
    %c0_i32_1 = arith.constant 0 : i32
    return %c0_i32, %c0_i32_0 : i32, i32
  }
  func.func @transform_1(%arg0: i32, %arg1: i32) -> (i32, i32) {
    %c0_i32 = arith.constant 0 : i32
    %c0_i32_0 = arith.constant 0 : i32
    %c0_i32_1 = arith.constant 0 : i32
    return %c0_i32, %c0_i32_0 : i32, i32
  }
  func.func @transform_2(%arg0: i32, %arg1: i32) -> (i32, i32, i32, i32) {
    %c0_i32 = arith.constant 0 : i32
    %c0_i32_0 = arith.constant 0 : i32
    %c0_i32_1 = arith.constant 0 : i32
    return %arg1, %arg0, %c0_i32, %c0_i32_0 : i32, i32, i32, i32
  }
  func.func @transform_3(%arg0: i32, %arg1: i32) -> (i32, i32, i32, i32) {
    %c0_i32 = arith.constant 0 : i32
    %c0_i32_0 = arith.constant 0 : i32
    %c0_i32_1 = arith.constant 0 : i32
    return %arg0, %arg1, %c0_i32, %c0_i32_0 : i32, i32, i32, i32
  }
}

</mosaic_0001>

<llo_original>
// kernel: tpu_custom_call.1
$region0: #{tpu_custom_call.1}
  #allocation0 [shape = 'u32[]', space=smem, size = 0x4, offset = 0x4, fixed_abs, tag = 'smem constant byte address 0x4 - core index']
  #allocation1 [shape = 'u32[72,128]{1,0:T(1,128)}', space=vmem, size = 0x9000, scoped, tag = 'internal scratch']
  #allocation6 [shape = 's32[]', space=sflag, size = 0x4, offset = 0, fixed_abs, tag = 'sflag constant byte address 0x0 - dummy sync flag']
  %s0 = inlined_call_operand.vmem [shape: f32[16,24], index: 0, kind: input, shape index: {}]
  %s1 = inlined_call_operand.vmem [shape: f32[24,16], index: 1, kind: input, shape index: {}]
  %s2 = inlined_call_operand.hbm [shape: f32[8,3,24,24], index: 2, kind: input, shape index: {}]
  %s3 = inlined_call_operand.hbm [shape: f32[3,8,16,16], index: 3, kind: output, shape index: {}]
  %s4 = sld [smem:[#allocation0]]
  $region49: #{tpu_custom_call.1} parent=0
    _
  %s6 = ssub.s32 1, %s4
  %s7 = scalar_select 0, %s6, %s4
  $region1: #{tpu_custom_call.1} parent=0
    #allocation2 [shape = 'u8[196608]{0}', space=vmem, size = 0x30000, scoped, tag = 'input window, operand 2']
    #allocation3 [shape = 's32[2]{0}', space=sflag, size = 0x8, scoped, tag = 'scoped memory for tpu_custom_call.1']
    #allocation4 [shape = 's32[2]{0}', space=sflag, size = 0x8, scoped, tag = 'scoped memory for tpu_custom_call.1']
    #allocation5 [shape = 'u8[131072]{0}', space=vmem, size = 0x20000, scoped, tag = 'output window, operand 0']
    %8 = vsyncpa [#allocation3], 0
    %s9 = scalar_lea.sflag [#allocation3], 1
    %10 = vsyncpa %s9, 0
    %11 = vsyncpa [#allocation4], 0
    %s12 = scalar_lea.sflag [#allocation4], 1
    %13 = vsyncpa %s12, 0
    loop: start=0, step=1, limit=5
    $region2: #{tpu_custom_call.1} parent=1 // loop_pre_header
      _
    $region3: #{tpu_custom_call.1} parent=1 // loop_header
      %s15 = sphi 0, %s19
      %p16 = scmp.ge.s32.totalorder %s15, 5
      %s22 = sphi 0, %s34
      %s23 = sphi 0, %s30
      %s24 = sphi 0, %s22
      %s25 = sphi 0, %s23
      %s26 = sphi 0, %s24
      %s27 = sphi 0, %s25
      %s35 = sphi 0, %s35
      %s37 = sphi 0, %s35
      %s38 = sphi 0, %s37
      %s52 = sphi 0, %s38
      %s56 = sphi 0, %s56
      %s58 = sphi 0, %s56
      %s59 = sphi 0, %s58
      %s73 = sphi 0, %s59
      %s81 = sphi 0, %s83
      %s84 = sphi 0, %s81
      %s85 = sphi 0, %s84
      %s101 = sphi 0, %s85
      %s109 = sphi 0, %s111
      %s112 = sphi 0, %s109
      %s113 = sphi 0, %s112
      %s129 = sphi 0, %s113
    $region4: #{tpu_custom_call.1} parent=1 // loop_header_branch
      %18 = sbr.rel (%p16) target = $region8
    $region5: #{tpu_custom_call.1} parent=1 // loop_body
      %s20 = ssub.s32 %s15, 1
      %s21 = ssub.s32 %s15, 2
      %s28 = sadd.s32 1, %s23
      %p29 = scmp.ge.s32.totalorder %s28, 1
      %s30 = scalar_select %p29, 0, %s28
      %s31 = sadd.s32 1, %s22
      %s32 = scalar_select %p29, %s31, %s22
      %p33 = scmp.ge.s32.totalorder %s32, 3
      %s34 = scalar_select %p33, 0, %s32
      %s36 = sadd.s32 %s35, 1
      %p39 = scmp.eq.s32.totalorder %s15, 2
      %p40 = scmp.ne.s32.totalorder %s35, %s37
      %p41 = scmp.eq.s32.totalorder %s15, 0
      %p42 = por %p40, %p41
      %p43 = scmp.ne.s32.totalorder %s35, %s37
      %p44 = scmp.eq.s32.totalorder %s20, 2
      %p45 = por %p43, %p44
      %p46 = scmp.ne.s32.totalorder %s37, %s38
      %p47 = scmp.eq.s32.totalorder %s20, 0
      %p48 = por %p46, %p47
      %p49 = scmp.ne.s32.totalorder %s37, %s38
      %p50 = scmp.eq.s32.totalorder %s21, 2
      %p51 = por %p49, %p50
      %p53 = scmp.ne.s32.totalorder %s38, %s52
      %p54 = scmp.eq.s32.totalorder %s21, 0
      %p55 = por %p53, %p54
      %s57 = sadd.s32 %s56, 1
      %p60 = scmp.eq.s32.totalorder %s15, 2
      %p61 = scmp.ne.s32.totalorder %s56, %s58
      %p62 = scmp.eq.s32.totalorder %s15, 0
      %p63 = por %p61, %p62
      %p64 = scmp.ne.s32.totalorder %s56, %s58
      %p65 = scmp.eq.s32.totalorder %s20, 2
      %p66 = por %p64, %p65
      %p67 = scmp.ne.s32.totalorder %s58, %s59
      %p68 = scmp.eq.s32.totalorder %s20, 0
      %p69 = por %p67, %p68
      %p70 = scmp.ne.s32.totalorder %s58, %s59
      %p71 = scmp.eq.s32.totalorder %s21, 2
      %p72 = por %p70, %p71
      %p74 = scmp.ne.s32.totalorder %s59, %s73
      %p75 = scmp.eq.s32.totalorder %s21, 0
      %p76 = por %p74, %p75
      %s77 = ssub.s32 %s23, %s30
      %s78 = ssub.s32 %s22, %s34
      %s79 = sor.u32 %s77, %s78
      %p80 = scmp.eq.s32.totalorder %s79, 0
      %s82 = sadd.s32 %s81, 1
      %s83 = scalar_select %p80, %s81, %s82
      %p86 = pneg %p80
      %p87 = scmp.eq.s32.totalorder %s15, 2
      %p88 = por %p86, %p87
      %p89 = scmp.ne.s32.totalorder %s81, %s84
      %p90 = scmp.eq.s32.totalorder %s15, 0
      %p91 = por %p89, %p90
      %p92 = scmp.ne.s32.totalorder %s81, %s84
      %p93 = scmp.eq.s32.totalorder %s20, 2
      %p94 = por %p92, %p93
      %p95 = scmp.ne.s32.totalorder %s84, %s85
      %p96 = scmp.eq.s32.totalorder %s20, 0
      %p97 = por %p95, %p96
      %p98 = scmp.ne.s32.totalorder %s84, %s85
      %p99 = scmp.eq.s32.totalorder %s21, 2
      %p100 = por %p98, %p99
      %p102 = scmp.ne.s32.totalorder %s85, %s101
      %p103 = scmp.eq.s32.totalorder %s21, 0
      %p104 = por %p102, %p103
      %s105 = ssub.s32 %s22, %s34
      %s106 = ssub.s32 %s23, %s30
      %s107 = sor.u32 %s105, %s106
      %p108 = scmp.eq.s32.totalorder %s107, 0
      %s110 = sadd.s32 %s109, 1
      %s111 = scalar_select %p108, %s109, %s110
      %p114 = pneg %p108
      %p115 = scmp.eq.s32.totalorder %s15, 2
      %p116 = por %p114, %p115
      %p117 = scmp.ne.s32.totalorder %s109, %s112
      %p118 = scmp.eq.s32.totalorder %s15, 0
      %p119 = por %p117, %p118
      %p120 = scmp.ne.s32.totalorder %s109, %s112
      %p121 = scmp.eq.s32.totalorder %s20, 2
      %p122 = por %p120, %p121
      %p123 = scmp.ne.s32.totalorder %s112, %s113
      %p124 = scmp.eq.s32.totalorder %s20, 0
      %p125 = por %p123, %p124
      %p126 = scmp.ne.s32.totalorder %s112, %s113
      %p127 = scmp.eq.s32.totalorder %s21, 2
      %p128 = por %p126, %p127
      %p130 = scmp.ne.s32.totalorder %s113, %s129
      %p131 = scmp.eq.s32.totalorder %s21, 0
      %p132 = por %p130, %p131
      %p133 = scmp.le.s32.totalorder 1, %s15
      %p134 = scmp.lt.s32.totalorder %s15, 4
      %p135 = pnand %p133, %p134
      %p136 = pneg %p135
      // Predicated region
      $region9: #{tpu_custom_call.1} parent=5 // pred_check
        _
      $region10: #{tpu_custom_call.1} parent=5 // pred_check_branch
        %138 = sbr.rel (%p135) target = $region12
      $region11: #{tpu_custom_call.1} parent=5 // pred_region
        %s139 = ssub.s32 %s15, 1
        // Predicated region
        $region13: #{tpu_custom_call.1} parent=11 // pred_check
          %p140 = pneg %p48
        $region14: #{tpu_custom_call.1} parent=11 // pred_check_branch
          %142 = sbr.rel (%p140) target = $region16
        $region15: #{tpu_custom_call.1} parent=11 // pred_region
          _
        $region16: #{tpu_custom_call.1} parent=11 // pred_fallthru
          _
        // Predicated region
        $region17: #{tpu_custom_call.1} parent=11 // pred_check
          %p143 = pneg %p69
        $region18: #{tpu_custom_call.1} parent=11 // pred_check_branch
          %145 = sbr.rel (%p143) target = $region20
        $region19: #{tpu_custom_call.1} parent=11 // pred_region
          _
        $region20: #{tpu_custom_call.1} parent=11 // pred_fallthru
          _
      $region12: #{tpu_custom_call.1} parent=5 // pred_fallthru
        _
      %p146 = scmp.lt.s32.totalorder %s15, 3
      // Predicated region
      $region21: #{tpu_custom_call.1} parent=5 // pred_check
        %p147 = pneg %p146
      $region22: #{tpu_custom_call.1} parent=5 // pred_check_branch
        %149 = sbr.rel (%p147) target = $region24
      $region23: #{tpu_custom_call.1} parent=5 // pred_region
        // Predicated region
        $region25: #{tpu_custom_call.1} parent=23 // pred_check
          %p150 = pneg %p91
        $region26: #{tpu_custom_call.1} parent=23 // pred_check_branch
          %152 = sbr.rel (%p150) target = $region28
        $region27: #{tpu_custom_call.1} parent=23 // pred_region
          #allocation7 [shape = 'u32[6]{0}', space=smem, size = 0x18, scoped, tag = 'DMA stride descriptor']
          %s153 = sand.u32 %s81, 1
          %s154 = scalar_lea.sflag [#allocation3], %s153
          %s155 = sand.u32 %s81, 1
          %s156 = smul.addr %s155, 192
          %s157 = scalar_lea.vmem [#allocation2], %s156
          %s158 = smul.u32 8, %s23
          %160 = vsyncadd %s154, 0
          %s161 = smul.addr %s22, 3
          %s162 = smul.addr %s158, 9
          %s163 = sadd.s32 %s161, %s162
          %s164 = smul.addr %s163, 8
          %s165 = scalar_lea.hbm %s2, %s164
          %s167 = sshll.u32 1, 14
          %s168 = sxor.u32 4294967295, %s167
          %s170 = sld [smem:[#allocation0]]
          %s171 = sadd.s32 2, %s170
          %s173 = sshll.u32 7, 26
          %s174 = sxor.u32 4294967295, %s173
          %s175 = sand.u32 0, %s174
          %s176 = sshll.u32 %s171, 26
          %s177 = sor.u32 %s175, %s176
          %s178 = sshll.u32 %s165, 4
          %s179 = int_to_ptr.hbm [resolvable:$true] %s178
          %s180 = sshll.u32 %s157, 4
          %s181 = int_to_ptr.vmem [resolvable:$true] %s180
          %187 = sst [smem:[#allocation7]] 1152
          %s188 = scalar_lea.smem [#allocation7], 1
          %189 = sst [smem:[%s188]] 384
          %s190 = scalar_lea.smem [#allocation7], 2
          %191 = sst [smem:[%s190]] 3
          %s192 = scalar_lea.smem [#allocation7], 3
          %193 = sst [smem:[%s192]] 128
          %s194 = scalar_lea.smem [#allocation7], 4
          %195 = sst [smem:[%s194]] 128
          %s196 = scalar_lea.smem [#allocation7], 5
          %197 = sst [smem:[%s196]] 8
          %199 = dma.general %s179, 3072, %s181, %s154, [#allocation6], [#allocation7], %s177, 0
        $region28: #{tpu_custom_call.1} parent=23 // pred_fallthru
          _
      $region24: #{tpu_custom_call.1} parent=5 // pred_fallthru
        _
      %p200 = scmp.le.s32.totalorder 1, %s15
      %p201 = scmp.lt.s32.totalorder %s15, 4
      %p202 = pnand %p200, %p201
      %p203 = pneg %p202
      // Predicated region
      $region29: #{tpu_custom_call.1} parent=5 // pred_check
        _
      $region30: #{tpu_custom_call.1} parent=5 // pred_check_branch
        %205 = sbr.rel (%p202) target = $region32
      $region31: #{tpu_custom_call.1} parent=5 // pred_region
        %s206 = ssub.s32 %s15, 1
        %s207 = sand.u32 %s84, 1
        %s208 = scalar_lea.sflag [#allocation3], %s207
        %s209 = sand.u32 %s84, 1
        %s210 = smul.addr %s209, 192
        %s211 = scalar_lea.vmem [#allocation2], %s210
        // Predicated region
        $region33: #{tpu_custom_call.1} parent=31 // pred_check
          %p212 = pneg %p97
        $region34: #{tpu_custom_call.1} parent=31 // pred_check_branch
          %214 = sbr.rel (%p212) target = $region36
        $region35: #{tpu_custom_call.1} parent=31 // pred_region
          %216 = dma.done %s208, 3072
        $region36: #{tpu_custom_call.1} parent=31 // pred_fallthru
          _
        %p217 = pneg %p48
        %p218 = pneg %p45
        %p219 = pneg %p69
        %p220 = pneg %p66
        %s221 = sand.u32 %s84, 1
        %s222 = scalar_lea.sflag [#allocation3], %s221
        %s223 = sand.u32 %s84, 1
        %s224 = smul.addr %s223, 192
        %s225 = scalar_lea.vmem [#allocation2], %s224
        %p226 = pneg %p97
        %p227 = pneg %p94
        %p228 = pneg %p125
        %p229 = pneg %p122
        %s230 = sand.u32 %s112, 1
        %s231 = scalar_lea.sflag [#allocation4], %s230
        %s232 = sand.u32 %s112, 1
        %s233 = smul.addr %s232, 128
        %s234 = scalar_lea.vmem [#allocation5], %s233
        %s235 = smul.u32 8, %s25
        %s236 = smul.u32 8, %s25
        %v237 = vld [vmem:[%s211] sm:$0xff]
        %v238 = vld [vmem:[%s211 + $0x8] sm:$0xff]
        %v239 = vld [vmem:[%s211 + $0x10] sm:$0xff]
        %v240 = vld [vmem:[%s211 + $0x18] sm:$0xff]
        %v241 = vld [vmem:[%s211 + $0x20] sm:$0xff]
        %v242 = vld [vmem:[%s211 + $0x28] sm:$0xff]
        %v243 = vld [vmem:[%s211 + $0x30] sm:$0xff]
        %v244 = vld [vmem:[%s211 + $0x38] sm:$0xff]
        %v245 = vld [vmem:[%s211 + $0x40] sm:$0xff]
        %v246 = vld [vmem:[%s211 + $0x48] sm:$0xff]
        %v247 = vld [vmem:[%s211 + $0x50] sm:$0xff]
        %v248 = vld [vmem:[%s211 + $0x58] sm:$0xff]
        %v249 = vld [vmem:[%s211 + $0x60] sm:$0xff]
        %v250 = vld [vmem:[%s211 + $0x68] sm:$0xff]
        %v251 = vld [vmem:[%s211 + $0x70] sm:$0xff]
        %v252 = vld [vmem:[%s211 + $0x78] sm:$0xff]
        %v253 = vld [vmem:[%s211 + $0x80] sm:$0xff]
        %v254 = vld [vmem:[%s211 + $0x88] sm:$0xff]
        %v255 = vld [vmem:[%s211 + $0x90] sm:$0xff]
        %v256 = vld [vmem:[%s211 + $0x98] sm:$0xff]
        %v257 = vld [vmem:[%s211 + $0xa0] sm:$0xff]
        %v258 = vld [vmem:[%s211 + $0xa8] sm:$0xff]
        %v259 = vld [vmem:[%s211 + $0xb0] sm:$0xff]
        %v260 = vld [vmem:[%s211 + $0xb8] sm:$0xff]
        %v261 = vld [vmem:[%s1] sm:$0xff]
        %v262 = vld [vmem:[%s1 + $0x8] sm:$0xff]
        %v263 = vld [vmem:[%s1 + $0x10] sm:$0xff]
        %vm264 = vcmask 195584
        %v266 = vsel %vm264, %v237, 0
        %v269 = vsel %vm264, %v238, 0
        %v272 = vsel %vm264, %v239, 0
        %v275 = vsel %vm264, %v240, 0
        %v278 = vsel %vm264, %v241, 0
        %v281 = vsel %vm264, %v242, 0
        %v284 = vsel %vm264, %v243, 0
        %v287 = vsel %vm264, %v244, 0
        %v290 = vsel %vm264, %v245, 0
        %v293 = vsel %vm264, %v246, 0
        %v296 = vsel %vm264, %v247, 0
        %v299 = vsel %vm264, %v248, 0
        %v302 = vsel %vm264, %v249, 0
        %v305 = vsel %vm264, %v250, 0
        %v308 = vsel %vm264, %v251, 0
        %v311 = vsel %vm264, %v252, 0
        %v314 = vsel %vm264, %v253, 0
        %v317 = vsel %vm264, %v254, 0
        %v320 = vsel %vm264, %v255, 0
        %v323 = vsel %vm264, %v256, 0
        %v326 = vsel %vm264, %v257, 0
        %v329 = vsel %vm264, %v258, 0
        %v332 = vsel %vm264, %v259, 0
        %v335 = vsel %vm264, %v260, 0
        %337 = vmatpush.msra.mxu0 0.0
        %338 = vmatpush.msra.mxu0 0.0
        %339 = vmatpush.msra.mxu0 0.0
        %340 = vmatpush.msra.mxu0 0.0
        %341 = vmatpush.msra.mxu0 0.0
        %342 = vmatpush.msra.mxu0 0.0
        %343 = vmatpush.msra.mxu0 0.0
        %344 = vmatpush.msra.mxu0 0.0
        %345 = vmatpush.msra.mxu0 0.0
        %346 = vmatpush.msra.mxu0 0.0
        %347 = vmatpush.msra.mxu0 0.0
        %348 = vmatpush.msra.mxu0 0.0
        %349 = vmatpush.msra.mxu0 0.0
        %350 = vmatpush.msra.mxu0 %v263
        %351 = vmatpush.msra.mxu0 %v262
        %352 = vmatpush.msra.mxu0 %v261
        %353 = vmatmul.f32.gmra.mxu0 %v266
        %v354 = vpop.f32.mrf.mxu0
        %v355 = vadd.f32 0.0, %v354
        %356 = vmatmul.f32.gmra.mxu0 %v269
        %v357 = vpop.f32.mrf.mxu0
        %v358 = vadd.f32 0.0, %v357
        %359 = vmatmul.f32.gmra.mxu0 %v272
        %v360 = vpop.f32.mrf.mxu0
        %v361 = vadd.f32 0.0, %v360
        %362 = vmatmul.f32.gmra.mxu0 %v275
        %v363 = vpop.f32.mrf.mxu0
        %v364 = vadd.f32 0.0, %v363
        %365 = vmatmul.f32.gmra.mxu0 %v278
        %v366 = vpop.f32.mrf.mxu0
        %v367 = vadd.f32 0.0, %v366
        %368 = vmatmul.f32.gmra.mxu0 %v281
        %v369 = vpop.f32.mrf.mxu0
        %v370 = vadd.f32 0.0, %v369
        %371 = vmatmul.f32.gmra.mxu0 %v284
        %v372 = vpop.f32.mrf.mxu0
        %v373 = vadd.f32 0.0, %v372
        %374 = vmatmul.f32.gmra.mxu0 %v287
        %v375 = vpop.f32.mrf.mxu0
        %v376 = vadd.f32 0.0, %v375
        %377 = vmatmul.f32.gmra.mxu0 %v290
        %v378 = vpop.f32.mrf.mxu0
        %v379 = vadd.f32 0.0, %v378
        %380 = vmatmul.f32.gmra.mxu0 %v293
        %v381 = vpop.f32.mrf.mxu0
        %v382 = vadd.f32 0.0, %v381
        %383 = vmatmul.f32.gmra.mxu0 %v296
        %v384 = vpop.f32.mrf.mxu0
        %v385 = vadd.f32 0.0, %v384
        %386 = vmatmul.f32.gmra.mxu0 %v299
        %v387 = vpop.f32.mrf.mxu0
        %v388 = vadd.f32 0.0, %v387
        %389 = vmatmul.f32.gmra.mxu0 %v302
        %v390 = vpop.f32.mrf.mxu0
        %v391 = vadd.f32 0.0, %v390
        %392 = vmatmul.f32.gmra.mxu0 %v305
        %v393 = vpop.f32.mrf.mxu0
        %v394 = vadd.f32 0.0, %v393
        %395 = vmatmul.f32.gmra.mxu0 %v308
        %v396 = vpop.f32.mrf.mxu0
        %v397 = vadd.f32 0.0, %v396
        %398 = vmatmul.f32.gmra.mxu0 %v311
        %v399 = vpop.f32.mrf.mxu0
        %v400 = vadd.f32 0.0, %v399
        %401 = vmatmul.f32.gmra.mxu0 %v314
        %v402 = vpop.f32.mrf.mxu0
        %v403 = vadd.f32 0.0, %v402
        %404 = vmatmul.f32.gmra.mxu0 %v317
        %v405 = vpop.f32.mrf.mxu0
        %v406 = vadd.f32 0.0, %v405
        %407 = vmatmul.f32.gmra.mxu0 %v320
        %v408 = vpop.f32.mrf.mxu0
        %v409 = vadd.f32 0.0, %v408
        %410 = vmatmul.f32.gmra.mxu0 %v323
        %v411 = vpop.f32.mrf.mxu0
        %v412 = vadd.f32 0.0, %v411
        %413 = vmatmul.f32.gmra.mxu0 %v326
        %v414 = vpop.f32.mrf.mxu0
        %v415 = vadd.f32 0.0, %v414
        %416 = vmatmul.f32.gmra.mxu0 %v329
        %v417 = vpop.f32.mrf.mxu0
        %v418 = vadd.f32 0.0, %v417
        %419 = vmatmul.f32.gmra.mxu0 %v332
        %v420 = vpop.f32.mrf.mxu0
        %v421 = vadd.f32 0.0, %v420
        %422 = vmatmul.f32.gmra.mxu0 %v335
        %v423 = vpop.f32.mrf.mxu0
        %v424 = vadd.f32 0.0, %v423
        %425 = vdwg.mxu0
        %v426 = vld [vmem:[%s0] sm:$0xff]
        %v427 = vld [vmem:[%s0 + $0x8] sm:$0xff]
        %v429 = vsel %vm264, %v426, 0
        %v432 = vsel %vm264, %v427, 0
        %434 = vmatpush.msra.mxu0 0.0
        %435 = vmatpush.msra.mxu0 0.0
        %436 = vmatpush.msra.mxu0 0.0
        %437 = vmatpush.msra.mxu0 0.0
        %438 = vmatpush.msra.mxu0 0.0
        %439 = vmatpush.msra.mxu0 0.0
        %440 = vmatpush.msra.mxu0 0.0
        %441 = vmatpush.msra.mxu0 0.0
        %442 = vmatpush.msra.mxu0 0.0
        %443 = vmatpush.msra.mxu0 0.0
        %444 = vmatpush.msra.mxu0 0.0
        %445 = vmatpush.msra.mxu0 0.0
        %446 = vmatpush.msra.mxu0 0.0
        %447 = vmatpush.msra.mxu0 %v361
        %448 = vmatpush.msra.mxu0 %v358
        %449 = vmatpush.msra.mxu0 %v355
        %450 = vmatmul.f32.gmra.mxu0 %v429
        %v451 = vpop.f32.mrf.mxu0
        %v452 = vadd.f32 0.0, %v451
        %453 = vmatmul.f32.gmra.mxu0 %v432
        %v454 = vpop.f32.mrf.mxu0
        %v455 = vadd.f32 0.0, %v454
        %456 = vdwg.mxu0
        %457 = vmatpush.msra.mxu0 0.0
        %458 = vmatpush.msra.mxu0 0.0
        %459 = vmatpush.msra.mxu0 0.0
        %460 = vmatpush.msra.mxu0 0.0
        %461 = vmatpush.msra.mxu0 0.0
        %462 = vmatpush.msra.mxu0 0.0
        %463 = vmatpush.msra.mxu0 0.0
        %464 = vmatpush.msra.mxu0 0.0
        %465 = vmatpush.msra.mxu0 0.0
        %466 = vmatpush.msra.mxu0 0.0
        %467 = vmatpush.msra.mxu0 0.0
        %468 = vmatpush.msra.mxu0 0.0
        %469 = vmatpush.msra.mxu0 0.0
        %470 = vmatpush.msra.mxu0 %v370
        %471 = vmatpush.msra.mxu0 %v367
        %472 = vmatpush.msra.mxu0 %v364
        %473 = vmatmul.f32.gmra.mxu0 %v429
        %v474 = vpop.f32.mrf.mxu0
        %v475 = vadd.f32 0.0, %v474
        %476 = vmatmul.f32.gmra.mxu0 %v432
        %v477 = vpop.f32.mrf.mxu0
        %v478 = vadd.f32 0.0, %v477
        %479 = vdwg.mxu0
        %480 = vmatpush.msra.mxu0 0.0
        %481 = vmatpush.msra.mxu0 0.0
        %482 = vmatpush.msra.mxu0 0.0
        %483 = vmatpush.msra.mxu0 0.0
        %484 = vmatpush.msra.mxu0 0.0
        %485 = vmatpush.msra.mxu0 0.0
        %486 = vmatpush.msra.mxu0 0.0
        %487 = vmatpush.msra.mxu0 0.0
        %488 = vmatpush.msra.mxu0 0.0
        %489 = vmatpush.msra.mxu0 0.0
        %490 = vmatpush.msra.mxu0 0.0
        %491 = vmatpush.msra.mxu0 0.0
        %492 = vmatpush.msra.mxu0 0.0
        %493 = vmatpush.msra.mxu0 %v379
        %494 = vmatpush.msra.mxu0 %v376
        %495 = vmatpush.msra.mxu0 %v373
        %496 = vmatmul.f32.gmra.mxu0 %v429
        %v497 = vpop.f32.mrf.mxu0
        %v498 = vadd.f32 0.0, %v497
        %499 = vmatmul.f32.gmra.mxu0 %v432
        %v500 = vpop.f32.mrf.mxu0
        %v501 = vadd.f32 0.0, %v500
        %502 = vdwg.mxu0
        %503 = vmatpush.msra.mxu0 0.0
        %504 = vmatpush.msra.mxu0 0.0
        %505 = vmatpush.msra.mxu0 0.0
        %506 = vmatpush.msra.mxu0 0.0
        %507 = vmatpush.msra.mxu0 0.0
        %508 = vmatpush.msra.mxu0 0.0
        %509 = vmatpush.msra.mxu0 0.0
        %510 = vmatpush.msra.mxu0 0.0
        %511 = vmatpush.msra.mxu0 0.0
        %512 = vmatpush.msra.mxu0 0.0
        %513 = vmatpush.msra.mxu0 0.0
        %514 = vmatpush.msra.mxu0 0.0
        %515 = vmatpush.msra.mxu0 0.0
        %516 = vmatpush.msra.mxu0 %v388
        %517 = vmatpush.msra.mxu0 %v385
        %518 = vmatpush.msra.mxu0 %v382
        %519 = vmatmul.f32.gmra.mxu0 %v429
        %v520 = vpop.f32.mrf.mxu0
        %v521 = vadd.f32 0.0, %v520
        %522 = vmatmul.f32.gmra.mxu0 %v432
        %v523 = vpop.f32.mrf.mxu0
        %v524 = vadd.f32 0.0, %v523
        %525 = vdwg.mxu0
        %526 = vmatpush.msra.mxu0 0.0
        %527 = vmatpush.msra.mxu0 0.0
        %528 = vmatpush.msra.mxu0 0.0
        %529 = vmatpush.msra.mxu0 0.0
        %530 = vmatpush.msra.mxu0 0.0
        %531 = vmatpush.msra.mxu0 0.0
        %532 = vmatpush.msra.mxu0 0.0
        %533 = vmatpush.msra.mxu0 0.0
        %534 = vmatpush.msra.mxu0 0.0
        %535 = vmatpush.msra.mxu0 0.0
        %536 = vmatpush.msra.mxu0 0.0
        %537 = vmatpush.msra.mxu0 0.0
        %538 = vmatpush.msra.mxu0 0.0
        %539 = vmatpush.msra.mxu0 %v397
        %540 = vmatpush.msra.mxu0 %v394
        %541 = vmatpush.msra.mxu0 %v391
        %542 = vmatmul.f32.gmra.mxu0 %v429
        %v543 = vpop.f32.mrf.mxu0
        %v544 = vadd.f32 0.0, %v543
        %545 = vmatmul.f32.gmra.mxu0 %v432
        %v546 = vpop.f32.mrf.mxu0
        %v547 = vadd.f32 0.0, %v546
        %548 = vdwg.mxu0
        %549 = vmatpush.msra.mxu0 0.0
        %550 = vmatpush.msra.mxu0 0.0
        %551 = vmatpush.msra.mxu0 0.0
        %552 = vmatpush.msra.mxu0 0.0
        %553 = vmatpush.msra.mxu0 0.0
        %554 = vmatpush.msra.mxu0 0.0
        %555 = vmatpush.msra.mxu0 0.0
        %556 = vmatpush.msra.mxu0 0.0
        %557 = vmatpush.msra.mxu0 0.0
        %558 = vmatpush.msra.mxu0 0.0
        %559 = vmatpush.msra.mxu0 0.0
        %560 = vmatpush.msra.mxu0 0.0
        %561 = vmatpush.msra.mxu0 0.0
        %562 = vmatpush.msra.mxu0 %v406
        %563 = vmatpush.msra.mxu0 %v403
        %564 = vmatpush.msra.mxu0 %v400
        %565 = vmatmul.f32.gmra.mxu0 %v429
        %v566 = vpop.f32.mrf.mxu0
        %v567 = vadd.f32 0.0, %v566
        %568 = vmatmul.f32.gmra.mxu0 %v432
        %v569 = vpop.f32.mrf.mxu0
        %v570 = vadd.f32 0.0, %v569
        %571 = vdwg.mxu0
        %572 = vmatpush.msra.mxu0 0.0
        %573 = vmatpush.msra.mxu0 0.0
        %574 = vmatpush.msra.mxu0 0.0
        %575 = vmatpush.msra.mxu0 0.0
        %576 = vmatpush.msra.mxu0 0.0
        %577 = vmatpush.msra.mxu0 0.0
        %578 = vmatpush.msra.mxu0 0.0
        %579 = vmatpush.msra.mxu0 0.0
        %580 = vmatpush.msra.mxu0 0.0
        %581 = vmatpush.msra.mxu0 0.0
        %582 = vmatpush.msra.mxu0 0.0
        %583 = vmatpush.msra.mxu0 0.0
        %584 = vmatpush.msra.mxu0 0.0
        %585 = vmatpush.msra.mxu0 %v415
        %586 = vmatpush.msra.mxu0 %v412
        %587 = vmatpush.msra.mxu0 %v409
        %588 = vmatmul.f32.gmra.mxu0 %v429
        %v589 = vpop.f32.mrf.mxu0
        %v590 = vadd.f32 0.0, %v589
        %591 = vmatmul.f32.gmra.mxu0 %v432
        %v592 = vpop.f32.mrf.mxu0
        %v593 = vadd.f32 0.0, %v592
        %594 = vdwg.mxu0
        %595 = vmatpush.msra.mxu0 0.0
        %596 = vmatpush.msra.mxu0 0.0
        %597 = vmatpush.msra.mxu0 0.0
        %598 = vmatpush.msra.mxu0 0.0
        %599 = vmatpush.msra.mxu0 0.0
        %600 = vmatpush.msra.mxu0 0.0
        %601 = vmatpush.msra.mxu0 0.0
        %602 = vmatpush.msra.mxu0 0.0
        %603 = vmatpush.msra.mxu0 0.0
        %604 = vmatpush.msra.mxu0 0.0
        %605 = vmatpush.msra.mxu0 0.0
        %606 = vmatpush.msra.mxu0 0.0
        %607 = vmatpush.msra.mxu0 0.0
        %608 = vmatpush.msra.mxu0 %v424
        %609 = vmatpush.msra.mxu0 %v421
        %610 = vmatpush.msra.mxu0 %v418
        %611 = vmatmul.f32.gmra.mxu0 %v429
        %v612 = vpop.f32.mrf.mxu0
        %v613 = vadd.f32 0.0, %v612
        %614 = vmatmul.f32.gmra.mxu0 %v432
        %v615 = vpop.f32.mrf.mxu0
        %v616 = vadd.f32 0.0, %v615
        %617 = vdwg.mxu0
        %vm618 = vcmask 130048
        %619 = vst.msk [vmem:[%s234] sm:$0xff] %vm618, %v452
        %620 = vst.msk [vmem:[%s234 + $0x8] sm:$0xff] %vm618, %v455
        %621 = vst.msk [vmem:[%s234 + $0x10] sm:$0xff] %vm618, %v475
        %622 = vst.msk [vmem:[%s234 + $0x18] sm:$0xff] %vm618, %v478
        %623 = vst.msk [vmem:[%s234 + $0x20] sm:$0xff] %vm618, %v498
        %624 = vst.msk [vmem:[%s234 + $0x28] sm:$0xff] %vm618, %v501
        %625 = vst.msk [vmem:[%s234 + $0x30] sm:$0xff] %vm618, %v521
        %626 = vst.msk [vmem:[%s234 + $0x38] sm:$0xff] %vm618, %v524
        %627 = vst.msk [vmem:[%s234 + $0x40] sm:$0xff] %vm618, %v544
        %628 = vst.msk [vmem:[%s234 + $0x48] sm:$0xff] %vm618, %v547
        %629 = vst.msk [vmem:[%s234 + $0x50] sm:$0xff] %vm618, %v567
        %630 = vst.msk [vmem:[%s234 + $0x58] sm:$0xff] %vm618, %v570
        %631 = vst.msk [vmem:[%s234 + $0x60] sm:$0xff] %vm618, %v590
        %632 = vst.msk [vmem:[%s234 + $0x68] sm:$0xff] %vm618, %v593
        %633 = vst.msk [vmem:[%s234 + $0x70] sm:$0xff] %vm618, %v613
        %634 = vst.msk [vmem:[%s234 + $0x78] sm:$0xff] %vm618, %v616
        %s635 = sand.u32 %s112, 1
        %s636 = scalar_lea.sflag [#allocation4], %s635
        %s637 = sand.u32 %s112, 1
        %s638 = smul.addr %s637, 128
        %s639 = scalar_lea.vmem [#allocation5], %s638
        // Predicated region
        $region37: #{tpu_custom_call.1} parent=31 // pred_check
          %p640 = pneg %p122
        $region38: #{tpu_custom_call.1} parent=31 // pred_check_branch
          %642 = sbr.rel (%p640) target = $region40
        $region39: #{tpu_custom_call.1} parent=31 // pred_region
          %s643 = smul.u32 8, %s25
          %645 = vsyncadd %s636, 0
          %s646 = smul.addr %s643, 2
          %s647 = smul.addr %s24, 16
          %s648 = sadd.s32 %s646, %s647
          %s649 = smul.addr %s648, 8
          %s650 = scalar_lea.hbm %s3, %s649
          %s651 = sshll.u32 %s639, 4
          %s652 = int_to_ptr.vmem [resolvable:$true] %s651
          %s653 = sshll.u32 %s650, 4
          %s654 = int_to_ptr.hbm [resolvable:$true] %s653
          %659 = dma.vmem_to_hbm [thread:$0]  %s652, 2048, %s654, %s636, 128, 128, 8
        $region40: #{tpu_custom_call.1} parent=31 // pred_fallthru
          _
      $region32: #{tpu_custom_call.1} parent=5 // pred_fallthru
        _
      %p660 = scmp.le.s32.totalorder 2, %s15
      // Predicated region
      $region41: #{tpu_custom_call.1} parent=5 // pred_check
        %p661 = pneg %p660
      $region42: #{tpu_custom_call.1} parent=5 // pred_check_branch
        %663 = sbr.rel (%p661) target = $region44
      $region43: #{tpu_custom_call.1} parent=5 // pred_region
        %s664 = ssub.s32 %s15, 2
        // Predicated region
        $region45: #{tpu_custom_call.1} parent=43 // pred_check
          %p665 = pneg %p128
        $region46: #{tpu_custom_call.1} parent=43 // pred_check_branch
          %667 = sbr.rel (%p665) target = $region48
        $region47: #{tpu_custom_call.1} parent=43 // pred_region
          %s668 = sand.u32 %s113, 1
          %s669 = scalar_lea.sflag [#allocation4], %s668
          %s670 = sand.u32 %s113, 1
          %s671 = smul.addr %s670, 128
          %s672 = scalar_lea.vmem [#allocation5], %s671
          %674 = dma.done %s669, 2048
        $region48: #{tpu_custom_call.1} parent=43 // pred_fallthru
          _
      $region44: #{tpu_custom_call.1} parent=5 // pred_fallthru
        _
    $region6: #{tpu_custom_call.1} parent=1 // loop_footer
      %s19 = sadd.s32 1, %s15
    $region7: #{tpu_custom_call.1} parent=1 // loop_footer_branch
      %14 = sbr.rel target = $region3
    $region8: #{tpu_custom_call.1} parent=1 // loop_exit
      _
    %675 = vsyncpa [#allocation3], 1
    %s676 = scalar_lea.sflag [#allocation3], 1
    %677 = vsyncpa %s676, 1
    %678 = vsyncpa [#allocation4], 1
    %s679 = scalar_lea.sflag [#allocation4], 1
    %680 = vsyncpa %s679, 1

</llo_original>
